<compile_context>
chip_gen: v6e
topology: v6e:2x2x1
jax: 0.10.0
libtpu: 0.0.40
codegen_flags: <defaults>
</compile_context>

<pallas_src>
import jax
import jax.numpy as jnp
from jax import lax
from jax.experimental import pallas as pl
from jax.experimental.pallas import tpu as pltpu

SUBLANE = 8  # second-to-last-dim granularity for batch tiles


def _round_up(x, m):
    return ((x + m - 1) // m) * m


def _pick_chunk(tb, target=256):
    """Largest multiple of 8 that divides tb and is <= target (else tb)."""
    for c in range(min(tb, target), SUBLANE - 1, -SUBLANE):
        if tb % c == 0:
            return c
    return tb


def _make_lognet_kernel(tb, chunk):
    """Kernel for one (tb, D_in) batch tile, processed in `chunk`-row pieces."""
    n_chunks = tb // chunk

    def kernel(x_ref, w1_ref, b1_ref, w2_ref, b2_ref, w3_ref, b3_ref, o_ref):
        # Hoist weight/bias loads (and their broadcasts) out of the unrolled
        # loop: JAX does not CSE broadcast_in_dim, so reading them per chunk
        # would re-emit the load + broadcast once per unrolled chunk.
        w1 = w1_ref[...]
        w2 = w2_ref[...]
        w3 = w3_ref[...]
        b1 = b1_ref[...]
        b2 = b2_ref[...]
        b3 = b3_ref[...]

        def body(c, carry):
            r = pl.multiple_of(c * chunk, chunk)
            x = x_ref[pl.ds(r, chunk), :]

            # Layer 1: Linear -> clamp(min=1) -> log
            h = jnp.dot(x, w1, preferred_element_type=jnp.float32) + b1
            h = jnp.log(jnp.maximum(h, jnp.float32(1.0)))

            # Layer 2: Linear -> exp
            h = jnp.dot(h, w2, preferred_element_type=jnp.float32) + b2
            h = jnp.exp(h)

            # Layer 3: Linear (output head)
            y = jnp.dot(h, w3, preferred_element_type=jnp.float32) + b3
            o_ref[pl.ds(r, chunk), :] = y.astype(o_ref.dtype)
            return carry

        lax.fori_loop(0, n_chunks, body, 0, unroll=True)

    return kernel


def lognet_forward(x, params, *, batch_tile=2048):
    """x: (B, D_in) f32.  params: pre-transposed weights (in, out) + (1, out) biases."""
    w1, b1 = params["w1"], params["b1"]
    w2, b2 = params["w2"], params["b2"]
    w3, b3 = params["w3"], params["b3"]

    B, D_in = x.shape
    H = w1.shape[1]
    D_out = w3.shape[1]

    # Batch tiling: TB rows per grid step.  Keep the grid >= 2 steps and even
    # (when the batch allows) so v7x's two TensorCores split the "parallel"
    # batch axis evenly; single-TC v5e/v6e just run the steps sequentially.
    n_steps = max(1, -(-B // batch_tile))
    if B >= 2 * SUBLANE:
        n_steps = max(n_steps, 2)
        if n_steps % 2:
            n_steps += 1
    TB = _round_up(-(-B // n_steps), SUBLANE)
    B_p = TB * n_steps

    x_p = jnp.pad(x, ((0, B_p - B), (0, 0))) if B_p != B else x

    chunk = _pick_chunk(TB)
    kernel = _make_lognet_kernel(TB, chunk)

    flops = 2 * B_p * (D_in * H + H * H + H * D_out)
    transcendentals = 2 * B_p * H  # one log + one exp per hidden element
    bytes_accessed = 4 * (
        B_p * D_in + B_p * D_out                 # x in, y out
        + D_in * H + H * H + H * D_out           # weights (read once)
        + 2 * H + D_out                          # biases
    )

    def _resident(shape):
        # Constant block index: DMA'd once, stays VMEM-resident across the grid.
        return pl.BlockSpec(shape, lambda i: (0, 0))

    y_p = pl.pallas_call(
        kernel,
        out_shape=jax.ShapeDtypeStruct((B_p, D_out), jnp.float32),
        grid=(n_steps,),
        in_specs=[
            pl.BlockSpec((TB, D_in), lambda i: (i, 0)),   # x: streamed per tile
            _resident((D_in, H)), _resident((1, H)),      # w1, b1
            _resident((H, H)),    _resident((1, H)),      # w2, b2
            _resident((H, D_out)), _resident((1, D_out)), # w3, b3
        ],
        out_specs=pl.BlockSpec((TB, D_out), lambda i: (i, 0)),
        compiler_params=pltpu.CompilerParams(
            dimension_semantics=("parallel",),       # megacore split on v7x
            vmem_limit_bytes=32 * 1024 * 1024,       # ample for <2 MiB footprint
        ),
        cost_estimate=pl.CostEstimate(
            flops=flops,
            transcendentals=transcendentals,
            bytes_accessed=bytes_accessed,
        ),
    )(x_p, w1, b1, w2, b2, w3, b3)

    return y_p[:B] if B_p != B else y_p


def init_params(key, D_in, H, D_out):
    """PyTorch-Linear-style init (U[-1/sqrt(fan_in), 1/sqrt(fan_in)]).
    Weights stored pre-transposed: (in_features, out_features)."""
    ks = jax.random.split(key, 6)

    def lin(kw, kb, fan_in, fan_out):
        bound = 1.0 / jnp.sqrt(jnp.float32(fan_in))
        w = jax.random.uniform(kw, (fan_in, fan_out), jnp.float32, -bound, bound)
        b = jax.random.uniform(kb, (1, fan_out), jnp.float32, -bound, bound)
        return w, b

    w1, b1 = lin(ks[0], ks[1], D_in, H)
    w2, b2 = lin(ks[2], ks[3], H, H)
    w3, b3 = lin(ks[4], ks[5], H, D_out)
    return {"w1": w1, "b1": b1, "w2": w2, "b2": b2, "w3": w3, "b3": b3}


def lognet_ref(x, p):
    h = x @ p["w1"] + p["b1"]
    h = jnp.log(jnp.maximum(h, 1.0))
    h = h @ p["w2"] + p["b2"]
    h = jnp.exp(h)
    return h @ p["w3"] + p["b3"]


if __name__ == "__main__":
    D_in, H, D_out = 32, 32, 16
    key = jax.random.PRNGKey(0)
    kx_small, kx_big, kp = jax.random.split(key, 3)

    params = init_params(kp, D_in, H, D_out)

    # Small batch: single grid step, single inner chunk.
    x_small = jax.random.normal(kx_small, (8, D_in), jnp.float32)
    y_small = lognet_forward(x_small, params)
    jax.block_until_ready(y_small)
    y_small_ref = lognet_ref(x_small, params)
    assert y_small.shape == (8, D_out)
    assert jnp.allclose(y_small, y_small_ref, atol=1e-4, rtol=1e-4), "small-batch mismatch"

    # Larger, non-multiple batch: exercises the even 2-step grid (megacore on
    # v7x), batch remainder padding, and the inner chunk loop.
    x_big = jax.random.normal(kx_big, (1030, D_in), jnp.float32)
    y_big = lognet_forward(x_big, params)
    jax.block_until_ready(y_big)
    y_big_ref = lognet_ref(x_big, params)
    assert y_big.shape == (1030, D_out)
    assert jnp.allclose(y_big, y_big_ref, atol=1e-4, rtol=1e-4), "large-batch mismatch"

    print("KERNEL_OK")
</pallas_src>

<mosaic_0001>
module attributes {stable_mosaic.version = 11 : i64} {
  func.func @kernel(%arg0: i32, %arg1: memref<8x32xf32, #tpu.memory_space<vmem>>, %arg2: memref<32x32xf32, #tpu.memory_space<vmem>>, %arg3: memref<1x32xf32, #tpu.memory_space<vmem>>, %arg4: memref<32x32xf32, #tpu.memory_space<vmem>>, %arg5: memref<1x32xf32, #tpu.memory_space<vmem>>, %arg6: memref<32x16xf32, #tpu.memory_space<vmem>>, %arg7: memref<1x16xf32, #tpu.memory_space<vmem>>, %arg8: memref<8x16xf32, #tpu.memory_space<vmem>>) attributes {dimension_semantics = [#tpu.dimension_semantics<parallel>], iteration_bounds = array<i64: 1>, scalar_prefetch = 0 : i64, scratch_operands = 0 : i64, tpu.core_type = #tpu.core_type<tc>, window_params = [{transform_indices = @transform_0, window_bounds = array<i64: 8, 32>}, {pipeline_mode = #tpu.pipeline_mode<synchronous>, transform_indices = @transform_1, window_bounds = array<i64: 32, 32>}, {pipeline_mode = #tpu.pipeline_mode<synchronous>, transform_indices = @transform_2, window_bounds = array<i64: 1, 32>}, {pipeline_mode = #tpu.pipeline_mode<synchronous>, transform_indices = @transform_3, window_bounds = array<i64: 32, 32>}, {pipeline_mode = #tpu.pipeline_mode<synchronous>, transform_indices = @transform_4, window_bounds = array<i64: 1, 32>}, {pipeline_mode = #tpu.pipeline_mode<synchronous>, transform_indices = @transform_5, window_bounds = array<i64: 32, 16>}, {pipeline_mode = #tpu.pipeline_mode<synchronous>, transform_indices = @transform_6, window_bounds = array<i64: 1, 16>}, {transform_indices = @transform_7, window_bounds = array<i64: 8, 16>}]} {
    %c0 = arith.constant 0 : index
    %c0_0 = arith.constant 0 : index
    %0 = vector.load %arg2[%c0, %c0_0] : memref<32x32xf32, #tpu.memory_space<vmem>>, vector<32x32xf32>
    %c0_1 = arith.constant 0 : index
    %c0_2 = arith.constant 0 : index
    %1 = vector.load %arg4[%c0_1, %c0_2] : memref<32x32xf32, #tpu.memory_space<vmem>>, vector<32x32xf32>
    %c0_3 = arith.constant 0 : index
    %c0_4 = arith.constant 0 : index
    %2 = vector.load %arg6[%c0_3, %c0_4] : memref<32x16xf32, #tpu.memory_space<vmem>>, vector<32x16xf32>
    %c0_5 = arith.constant 0 : index
    %c0_6 = arith.constant 0 : index
    %3 = vector.load %arg3[%c0_5, %c0_6] : memref<1x32xf32, #tpu.memory_space<vmem>>, vector<1x32xf32>
    %c0_7 = arith.constant 0 : index
    %c0_8 = arith.constant 0 : index
    %4 = vector.load %arg5[%c0_7, %c0_8] : memref<1x32xf32, #tpu.memory_space<vmem>>, vector<1x32xf32>
    %c0_9 = arith.constant 0 : index
    %c0_10 = arith.constant 0 : index
    %5 = vector.load %arg7[%c0_9, %c0_10] : memref<1x16xf32, #tpu.memory_space<vmem>>, vector<1x16xf32>
    %c0_i32 = arith.constant 0 : i32
    %c8_i32 = arith.constant 8 : i32
    %6 = arith.muli %c0_i32, %c8_i32 : i32
    %7 = tpu.assume_multiple %6, 8 : i32
    %8 = arith.index_cast %7 : i32 to index
    %c0_11 = arith.constant 0 : index
    %9 = vector.load %arg1[%8, %c0_11] : memref<8x32xf32, #tpu.memory_space<vmem>>, vector<8x32xf32>
    %cst = arith.constant dense<0.000000e+00> : vector<8x32xf32>
    %10 = tpu.matmul %9, %0, %cst {dimension_numbers = #tpu.dot_dimension_numbers<[1], [0], [0], [1], [0, 0, 1, 1], [], []>} : vector<8x32xf32>, vector<32x32xf32>, vector<8x32xf32> -> vector<8x32xf32>
    %11 = vector.broadcast %3 : vector<1x32xf32> to vector<8x32xf32>
    %12 = arith.addf %10, %11 : vector<8x32xf32>
    %cst_12 = arith.constant 1.000000e+00 : f32
    %13 = vector.broadcast %cst_12 : f32 to vector<8x32xf32>
    %14 = arith.maximumf %12, %13 : vector<8x32xf32>
    %15 = math.log %14 : vector<8x32xf32>
    %cst_13 = arith.constant dense<0.000000e+00> : vector<8x32xf32>
    %16 = tpu.matmul %15, %1, %cst_13 {dimension_numbers = #tpu.dot_dimension_numbers<[1], [0], [0], [1], [0, 0, 1, 1], [], []>} : vector<8x32xf32>, vector<32x32xf32>, vector<8x32xf32> -> vector<8x32xf32>
    %17 = vector.broadcast %4 : vector<1x32xf32> to vector<8x32xf32>
    %18 = arith.addf %16, %17 : vector<8x32xf32>
    %19 = math.exp %18 : vector<8x32xf32>
    %cst_14 = arith.constant dense<0.000000e+00> : vector<8x16xf32>
    %20 = tpu.matmul %19, %2, %cst_14 {dimension_numbers = #tpu.dot_dimension_numbers<[1], [0], [0], [1], [0, 0, 1, 1], [], []>} : vector<8x32xf32>, vector<32x16xf32>, vector<8x16xf32> -> vector<8x16xf32>
    %21 = vector.broadcast %5 : vector<1x16xf32> to vector<8x16xf32>
    %22 = arith.addf %20, %21 : vector<8x16xf32>
    %23 = arith.index_cast %7 : i32 to index
    %c0_15 = arith.constant 0 : index
    %24 = vector.load %arg8[%23, %c0_15] : memref<8x16xf32, #tpu.memory_space<vmem>>, vector<8x16xf32>
    tpu.vector_store %arg8[%23, %c0_15], %22 {strides = array<i32>} : memref<8x16xf32, #tpu.memory_space<vmem>>, vector<8x16xf32>,
    %c1_i32 = arith.constant 1 : i32
    return
  }
  func.func @transform_0(%arg0: i32) -> (i32, i32) {
    %c0_i32 = arith.constant 0 : i32
    %c0_i32_0 = arith.constant 0 : i32
    return %arg0, %c0_i32 : i32, i32
  }
  func.func @transform_1(%arg0: i32) -> (i32, i32) {
    %c0_i32 = arith.constant 0 : i32
    %c0_i32_0 = arith.constant 0 : i32
    %c0_i32_1 = arith.constant 0 : i32
    return %c0_i32, %c0_i32_0 : i32, i32
  }
  func.func @transform_2(%arg0: i32) -> (i32, i32) {
    %c0_i32 = arith.constant 0 : i32
    %c0_i32_0 = arith.constant 0 : i32
    %c0_i32_1 = arith.constant 0 : i32
    return %c0_i32, %c0_i32_0 : i32, i32
  }
  func.func @transform_3(%arg0: i32) -> (i32, i32) {
    %c0_i32 = arith.constant 0 : i32
    %c0_i32_0 = arith.constant 0 : i32
    %c0_i32_1 = arith.constant 0 : i32
    return %c0_i32, %c0_i32_0 : i32, i32
  }
  func.func @transform_4(%arg0: i32) -> (i32, i32) {
    %c0_i32 = arith.constant 0 : i32
    %c0_i32_0 = arith.constant 0 : i32
    %c0_i32_1 = arith.constant 0 : i32
    return %c0_i32, %c0_i32_0 : i32, i32
  }
  func.func @transform_5(%arg0: i32) -> (i32, i32) {
    %c0_i32 = arith.constant 0 : i32
    %c0_i32_0 = arith.constant 0 : i32
    %c0_i32_1 = arith.constant 0 : i32
    return %c0_i32, %c0_i32_0 : i32, i32
  }
  func.func @transform_6(%arg0: i32) -> (i32, i32) {
    %c0_i32 = arith.constant 0 : i32
    %c0_i32_0 = arith.constant 0 : i32
    %c0_i32_1 = arith.constant 0 : i32
    return %c0_i32, %c0_i32_0 : i32, i32
  }
  func.func @transform_7(%arg0: i32) -> (i32, i32) {
    %c0_i32 = arith.constant 0 : i32
    %c0_i32_0 = arith.constant 0 : i32
    return %arg0, %c0_i32 : i32, i32
  }
}

</mosaic_0001>

<llo_original>
// kernel: tpu_custom_call.1
$region0: #{tpu_custom_call.1}
  #allocation0 [shape = 'u32[]', space=smem, size = 0x4, offset = 0x4, fixed_abs, tag = 'smem constant byte address 0x4 - core index']
  #allocation1 [shape = 'u32[144,128]{1,0:T(1,128)}', space=vmem, size = 0x12000, scoped, tag = 'internal scratch']
  %s0 = inlined_call_operand.vmem [shape: f32[8,32], index: 0, kind: input, shape index: {}]
  %s1 = inlined_call_operand.vmem [shape: f32[32,32], index: 1, kind: input, shape index: {}]
  %s2 = inlined_call_operand.vmem [shape: f32[1,32], index: 2, kind: input, shape index: {}]
  %s3 = inlined_call_operand.hbm [shape: f32[32,32], index: 3, kind: input, shape index: {}]
  %s4 = inlined_call_operand.vmem [shape: f32[1,32], index: 4, kind: input, shape index: {}]
  %s5 = inlined_call_operand.vmem [shape: f32[32,16], index: 5, kind: input, shape index: {}]
  %s6 = inlined_call_operand.vmem [shape: f32[1,16], index: 6, kind: input, shape index: {}]
  %s7 = inlined_call_operand.hbm [shape: f32[8,16], index: 7, kind: output, shape index: {}]
  %s8 = sld [smem:[#allocation0]]
  $region42: #{tpu_custom_call.1} parent=0
    _
  %s10 = ssub.s32 1, %s8
  %s11 = scalar_select 0, %s10, %s8
  $region1: #{tpu_custom_call.1} parent=0
    #allocation2 [shape = 'u8[16384]{0}', space=vmem, size = 0x4000, scoped, tag = 'input window, operand 3, single buffered']
    #allocation3 [shape = 's32[1]{0}', space=sflag, size = 0x4, scoped, tag = 'scoped memory for tpu_custom_call.1']
    #allocation4 [shape = 's32[1]{0}', space=sflag, size = 0x4, scoped, tag = 'scoped memory for tpu_custom_call.1']
    #allocation5 [shape = 'u8[4096]{0}', space=vmem, size = 0x1000, scoped, tag = 'output window, operand 0, single buffered']
    %12 = vsyncpa [#allocation3], 0
    %13 = vsyncpa [#allocation4], 0
    // Predicated region
    $region2: #{tpu_custom_call.1} parent=1 // pred_check
      _
    $region3: #{tpu_custom_call.1} parent=1 // pred_check_branch
      %15 = sbr.rel (0) target = $region5
    $region4: #{tpu_custom_call.1} parent=1 // pred_region
      _
    $region5: #{tpu_custom_call.1} parent=1 // pred_fallthru
      _
    // Predicated region
    $region6: #{tpu_custom_call.1} parent=1 // pred_check
      _
    $region7: #{tpu_custom_call.1} parent=1 // pred_check_branch
      %17 = sbr.rel (0) target = $region9
    $region8: #{tpu_custom_call.1} parent=1 // pred_region
      _
    $region9: #{tpu_custom_call.1} parent=1 // pred_fallthru
      _
    // Predicated region
    $region10: #{tpu_custom_call.1} parent=1 // pred_check
      _
    $region11: #{tpu_custom_call.1} parent=1 // pred_check_branch
      %19 = sbr.rel (0) target = $region13
    $region12: #{tpu_custom_call.1} parent=1 // pred_region
      _
    $region13: #{tpu_custom_call.1} parent=1 // pred_fallthru
      _
    // Predicated region
    $region14: #{tpu_custom_call.1} parent=1 // pred_check
      _
    $region15: #{tpu_custom_call.1} parent=1 // pred_check_branch
      %21 = sbr.rel (0) target = $region17
    $region16: #{tpu_custom_call.1} parent=1 // pred_region
      %s23 = ssub.s32 512, 512
      %24 = vsyncadd [#allocation3], %s23
      %s25 = sshll.u32 [#allocation2], 4
      %s26 = int_to_ptr.vmem [resolvable:$true] %s25
      %31 = dma.hbm_to_vmem [thread:$0]  %s3, 512, %s26, [#allocation3], 128, 128, 8
    $region17: #{tpu_custom_call.1} parent=1 // pred_fallthru
      _
    // Predicated region
    $region18: #{tpu_custom_call.1} parent=1 // pred_check
      _
    $region19: #{tpu_custom_call.1} parent=1 // pred_check_branch
      %33 = sbr.rel (0) target = $region21
    $region20: #{tpu_custom_call.1} parent=1 // pred_region
      _
    $region21: #{tpu_custom_call.1} parent=1 // pred_fallthru
      _
    // Predicated region
    $region22: #{tpu_custom_call.1} parent=1 // pred_check
      _
    $region23: #{tpu_custom_call.1} parent=1 // pred_check_branch
      %35 = sbr.rel (0) target = $region25
    $region24: #{tpu_custom_call.1} parent=1 // pred_region
      _
    $region25: #{tpu_custom_call.1} parent=1 // pred_fallthru
      _
    // Predicated region
    $region26: #{tpu_custom_call.1} parent=1 // pred_check
      _
    $region27: #{tpu_custom_call.1} parent=1 // pred_check_branch
      %37 = sbr.rel (0) target = $region29
    $region28: #{tpu_custom_call.1} parent=1 // pred_region
      _
    $region29: #{tpu_custom_call.1} parent=1 // pred_fallthru
      _
    // Predicated region
    $region30: #{tpu_custom_call.1} parent=1 // pred_check
      _
    $region31: #{tpu_custom_call.1} parent=1 // pred_check_branch
      %39 = sbr.rel (0) target = $region33
    $region32: #{tpu_custom_call.1} parent=1 // pred_region
      %40 = dma.done [#allocation3], 512
    $region33: #{tpu_custom_call.1} parent=1 // pred_fallthru
      _
    %v41 = vld [vmem:[%s1] sm:$0xff]
    %v42 = vld [vmem:[%s1 + $0x8] sm:$0xff]
    %v43 = vld [vmem:[%s1 + $0x10] sm:$0xff]
    %v44 = vld [vmem:[%s1 + $0x18] sm:$0xff]
    %v45 = vld [vmem:[#allocation2] sm:$0xff]
    %v46 = vld [vmem:[#allocation2 + $0x8] sm:$0xff]
    %v47 = vld [vmem:[#allocation2 + $0x10] sm:$0xff]
    %v48 = vld [vmem:[#allocation2 + $0x18] sm:$0xff]
    %v49 = vld [vmem:[%s5] sm:$0xff]
    %v50 = vld [vmem:[%s5 + $0x8] sm:$0xff]
    %v51 = vld [vmem:[%s5 + $0x10] sm:$0xff]
    %v52 = vld [vmem:[%s5 + $0x18] sm:$0xff]
    %v53 = vld [vmem:[%s2] sm:$0x1]
    %v54 = vld [vmem:[%s4] sm:$0x1]
    %v55 = vld [vmem:[%s6] sm:$0x1]
    %v56 = vld [vmem:[%s0] sm:$0xff]
    %v58 = vlaneseq
    %v59 = vshrl.u32 %v58, 7
    %v60 = vsub.s32 0, %v59
    %v61 = vrot.slane %v53, %v60
    %vm63 = vcmask 261120
    %v65 = vsel %vm63, %v56, 0
    %67 = vmatprep.subr.mxu0 0.0
    %68 = vmatpush1.msra.mxu0 0.0
    %69 = vmatprep.subr.mxu0 0.0
    %70 = vmatpush1.msra.mxu0 0.0
    %71 = vmatprep.subr.mxu0 0.0
    %72 = vmatpush1.msra.mxu0 0.0
    %73 = vmatprep.subr.mxu0 0.0
    %74 = vmatpush1.msra.mxu0 0.0
    %75 = vmatprep.subr.mxu0 0.0
    %76 = vmatpush1.msra.mxu0 0.0
    %77 = vmatprep.subr.mxu0 0.0
    %78 = vmatpush1.msra.mxu0 0.0
    %79 = vmatprep.subr.mxu0 0.0
    %80 = vmatpush1.msra.mxu0 0.0
    %81 = vmatprep.subr.mxu0 0.0
    %82 = vmatpush1.msra.mxu0 0.0
    %83 = vmatprep.subr.mxu0 0.0
    %84 = vmatpush1.msra.mxu0 0.0
    %85 = vmatprep.subr.mxu0 0.0
    %86 = vmatpush1.msra.mxu0 0.0
    %87 = vmatprep.subr.mxu0 0.0
    %88 = vmatpush1.msra.mxu0 0.0
    %89 = vmatprep.subr.mxu0 0.0
    %90 = vmatpush1.msra.mxu0 0.0
    %91 = vmatprep.subr.mxu0 0.0
    %92 = vmatpush1.msra.mxu0 %v44
    %93 = vmatprep.subr.mxu0 0.0
    %94 = vmatpush1.msra.mxu0 %v43
    %95 = vmatprep.subr.mxu0 0.0
    %96 = vmatpush1.msra.mxu0 %v42
    %97 = vmatprep.subr.mxu0 0.0
    %98 = vmatpush1.msra.mxu0 %v41
    %99 = vmatprep.subr.mxu0 0.0
    %100 = vmatpush2.msra.mxu0 0.0
    %101 = vmatprep.subr.mxu0 0.0
    %102 = vmatpush2.msra.mxu0 0.0
    %103 = vmatprep.subr.mxu0 0.0
    %104 = vmatpush2.msra.mxu0 0.0
    %105 = vmatprep.subr.mxu0 0.0
    %106 = vmatpush2.msra.mxu0 0.0
    %107 = vmatprep.subr.mxu0 0.0
    %108 = vmatpush2.msra.mxu0 0.0
    %109 = vmatprep.subr.mxu0 0.0
    %110 = vmatpush2.msra.mxu0 0.0
    %111 = vmatprep.subr.mxu0 0.0
    %112 = vmatpush2.msra.mxu0 0.0
    %113 = vmatprep.subr.mxu0 0.0
    %114 = vmatpush2.msra.mxu0 0.0
    %115 = vmatprep.subr.mxu0 0.0
    %116 = vmatpush2.msra.mxu0 0.0
    %117 = vmatprep.subr.mxu0 0.0
    %118 = vmatpush2.msra.mxu0 0.0
    %119 = vmatprep.subr.mxu0 0.0
    %120 = vmatpush2.msra.mxu0 0.0
    %121 = vmatprep.subr.mxu0 0.0
    %122 = vmatpush2.msra.mxu0 0.0
    %123 = vmatprep.subr.mxu0 0.0
    %124 = vmatpush2.msra.mxu0 0.0
    %125 = vmatprep.subr.mxu0 0.0
    %126 = vmatpush2.msra.mxu0 0.0
    %127 = vmatprep.subr.mxu0 0.0
    %128 = vmatpush2.msra.mxu0 0.0
    %129 = vmatprep.subr.mxu0 0.0
    %130 = vmatpush2.msra.mxu0 0.0
    %131 = vmatprep.mubr.f32.mxu0 0.0
    %132 = vmatmul.mubr.f32.gmra.mxu0 %v65
    %v133 = vpop.f32.mrf.mxu0
    %v134 = vadd.f32 %v61, %v133
    %v135 = vpop.f32.mrf.mxu0
    %136 = vdwg.mxu0
    %v137 = vmax.f32 %v134, 1.0
    %v138 = vlog2.pop %v137
    %v139 = vmul.f32 %v138, 0.6931472
    %v141 = vlaneseq
    %v142 = vshrl.u32 %v141, 7
    %v143 = vsub.s32 0, %v142
    %v144 = vrot.slane %v54, %v143
    %v147 = vsel %vm63, %v139, 0
    %149 = vmatprep.subr.mxu0 0.0
    %150 = vmatpush1.msra.mxu0 0.0
    %151 = vmatprep.subr.mxu0 0.0
    %152 = vmatpush1.msra.mxu0 0.0
    %153 = vmatprep.subr.mxu0 0.0
    %154 = vmatpush1.msra.mxu0 0.0
    %155 = vmatprep.subr.mxu0 0.0
    %156 = vmatpush1.msra.mxu0 0.0
    %157 = vmatprep.subr.mxu0 0.0
    %158 = vmatpush1.msra.mxu0 0.0
    %159 = vmatprep.subr.mxu0 0.0
    %160 = vmatpush1.msra.mxu0 0.0
    %161 = vmatprep.subr.mxu0 0.0
    %162 = vmatpush1.msra.mxu0 0.0
    %163 = vmatprep.subr.mxu0 0.0
    %164 = vmatpush1.msra.mxu0 0.0
    %165 = vmatprep.subr.mxu0 0.0
    %166 = vmatpush1.msra.mxu0 0.0
    %167 = vmatprep.subr.mxu0 0.0
    %168 = vmatpush1.msra.mxu0 0.0
    %169 = vmatprep.subr.mxu0 0.0
    %170 = vmatpush1.msra.mxu0 0.0
    %171 = vmatprep.subr.mxu0 0.0
    %172 = vmatpush1.msra.mxu0 0.0
    %173 = vmatprep.subr.mxu0 0.0
    %174 = vmatpush1.msra.mxu0 %v48
    %175 = vmatprep.subr.mxu0 0.0
    %176 = vmatpush1.msra.mxu0 %v47
    %177 = vmatprep.subr.mxu0 0.0
    %178 = vmatpush1.msra.mxu0 %v46
    %179 = vmatprep.subr.mxu0 0.0
    %180 = vmatpush1.msra.mxu0 %v45
    %181 = vmatprep.subr.mxu0 0.0
    %182 = vmatpush2.msra.mxu0 0.0
    %183 = vmatprep.subr.mxu0 0.0
    %184 = vmatpush2.msra.mxu0 0.0
    %185 = vmatprep.subr.mxu0 0.0
    %186 = vmatpush2.msra.mxu0 0.0
    %187 = vmatprep.subr.mxu0 0.0
    %188 = vmatpush2.msra.mxu0 0.0
    %189 = vmatprep.subr.mxu0 0.0
    %190 = vmatpush2.msra.mxu0 0.0
    %191 = vmatprep.subr.mxu0 0.0
    %192 = vmatpush2.msra.mxu0 0.0
    %193 = vmatprep.subr.mxu0 0.0
    %194 = vmatpush2.msra.mxu0 0.0
    %195 = vmatprep.subr.mxu0 0.0
    %196 = vmatpush2.msra.mxu0 0.0
    %197 = vmatprep.subr.mxu0 0.0
    %198 = vmatpush2.msra.mxu0 0.0
    %199 = vmatprep.subr.mxu0 0.0
    %200 = vmatpush2.msra.mxu0 0.0
    %201 = vmatprep.subr.mxu0 0.0
    %202 = vmatpush2.msra.mxu0 0.0
    %203 = vmatprep.subr.mxu0 0.0
    %204 = vmatpush2.msra.mxu0 0.0
    %205 = vmatprep.subr.mxu0 0.0
    %206 = vmatpush2.msra.mxu0 0.0
    %207 = vmatprep.subr.mxu0 0.0
    %208 = vmatpush2.msra.mxu0 0.0
    %209 = vmatprep.subr.mxu0 0.0
    %210 = vmatpush2.msra.mxu0 0.0
    %211 = vmatprep.subr.mxu0 0.0
    %212 = vmatpush2.msra.mxu0 0.0
    %213 = vmatprep.mubr.f32.mxu0 0.0
    %214 = vmatmul.mubr.f32.gmra.mxu0 %v147
    %v215 = vpop.f32.mrf.mxu0
    %v216 = vadd.f32 %v144, %v215
    %v217 = vpop.f32.mrf.mxu0
    %218 = vdwg.mxu0
    %v219 = vmul.f32 %v216, 1.442695
    %v220 = vpow.pop %v219
    %v222 = vlaneseq
    %v223 = vshrl.u32 %v222, 7
    %v224 = vsub.s32 0, %v223
    %v225 = vrot.slane %v55, %v224
    %v228 = vsel %vm63, %v220, 0
    %230 = vmatprep.subr.mxu0 0.0
    %231 = vmatpush1.msra.mxu0 0.0
    %232 = vmatprep.subr.mxu0 0.0
    %233 = vmatpush1.msra.mxu0 0.0
    %234 = vmatprep.subr.mxu0 0.0
    %235 = vmatpush1.msra.mxu0 0.0
    %236 = vmatprep.subr.mxu0 0.0
    %237 = vmatpush1.msra.mxu0 0.0
    %238 = vmatprep.subr.mxu0 0.0
    %239 = vmatpush1.msra.mxu0 0.0
    %240 = vmatprep.subr.mxu0 0.0
    %241 = vmatpush1.msra.mxu0 0.0
    %242 = vmatprep.subr.mxu0 0.0
    %243 = vmatpush1.msra.mxu0 0.0
    %244 = vmatprep.subr.mxu0 0.0
    %245 = vmatpush1.msra.mxu0 0.0
    %246 = vmatprep.subr.mxu0 0.0
    %247 = vmatpush1.msra.mxu0 0.0
    %248 = vmatprep.subr.mxu0 0.0
    %249 = vmatpush1.msra.mxu0 0.0
    %250 = vmatprep.subr.mxu0 0.0
    %251 = vmatpush1.msra.mxu0 0.0
    %252 = vmatprep.subr.mxu0 0.0
    %253 = vmatpush1.msra.mxu0 0.0
    %254 = vmatprep.subr.mxu0 0.0
    %255 = vmatpush1.msra.mxu0 %v52
    %256 = vmatprep.subr.mxu0 0.0
    %257 = vmatpush1.msra.mxu0 %v51
    %258 = vmatprep.subr.mxu0 0.0
    %259 = vmatpush1.msra.mxu0 %v50
    %260 = vmatprep.subr.mxu0 0.0
    %261 = vmatpush1.msra.mxu0 %v49
    %262 = vmatprep.subr.mxu0 0.0
    %263 = vmatpush2.msra.mxu0 0.0
    %264 = vmatprep.subr.mxu0 0.0
    %265 = vmatpush2.msra.mxu0 0.0
    %266 = vmatprep.subr.mxu0 0.0
    %267 = vmatpush2.msra.mxu0 0.0
    %268 = vmatprep.subr.mxu0 0.0
    %269 = vmatpush2.msra.mxu0 0.0
    %270 = vmatprep.subr.mxu0 0.0
    %271 = vmatpush2.msra.mxu0 0.0
    %272 = vmatprep.subr.mxu0 0.0
    %273 = vmatpush2.msra.mxu0 0.0
    %274 = vmatprep.subr.mxu0 0.0
    %275 = vmatpush2.msra.mxu0 0.0
    %276 = vmatprep.subr.mxu0 0.0
    %277 = vmatpush2.msra.mxu0 0.0
    %278 = vmatprep.subr.mxu0 0.0
    %279 = vmatpush2.msra.mxu0 0.0
    %280 = vmatprep.subr.mxu0 0.0
    %281 = vmatpush2.msra.mxu0 0.0
    %282 = vmatprep.subr.mxu0 0.0
    %283 = vmatpush2.msra.mxu0 0.0
    %284 = vmatprep.subr.mxu0 0.0
    %285 = vmatpush2.msra.mxu0 0.0
    %286 = vmatprep.subr.mxu0 0.0
    %287 = vmatpush2.msra.mxu0 0.0
    %288 = vmatprep.subr.mxu0 0.0
    %289 = vmatpush2.msra.mxu0 0.0
    %290 = vmatprep.subr.mxu0 0.0
    %291 = vmatpush2.msra.mxu0 0.0
    %292 = vmatprep.subr.mxu0 0.0
    %293 = vmatpush2.msra.mxu0 0.0
    %294 = vmatprep.mubr.f32.mxu0 0.0
    %295 = vmatmul.mubr.f32.gmra.mxu0 %v228
    %v296 = vpop.f32.mrf.mxu0
    %v297 = vadd.f32 %v225, %v296
    %v298 = vpop.f32.mrf.mxu0
    %299 = vdwg.mxu0
    %vm300 = vcmask 130048
    %301 = vst.msk [vmem:[#allocation5] sm:$0xff] %vm300, %v297
    // Predicated region
    $region34: #{tpu_custom_call.1} parent=1 // pred_check
      _
    $region35: #{tpu_custom_call.1} parent=1 // pred_check_branch
      %303 = sbr.rel (0) target = $region37
    $region36: #{tpu_custom_call.1} parent=1 // pred_region
      %s305 = ssub.s32 128, 128
      %306 = vsyncadd [#allocation4], %s305
      %s308 = sshll.u32 [#allocation5], 4
      %s309 = int_to_ptr.vmem [resolvable:$true] %s308
      %311 = dma.vmem_to_hbm [thread:$0]  %s309, 128, %s7, [#allocation4]
    $region37: #{tpu_custom_call.1} parent=1 // pred_fallthru
      _
    // Predicated region
    $region38: #{tpu_custom_call.1} parent=1 // pred_check
      _
    $region39: #{tpu_custom_call.1} parent=1 // pred_check_branch
      %313 = sbr.rel (0) target = $region41
    $region40: #{tpu_custom_call.1} parent=1 // pred_region
      %314 = dma.done [#allocation4], 128
    $region41: #{tpu_custom_call.1} parent=1 // pred_fallthru
      _
    %315 = vsyncpa [#allocation3], 1
    %316 = vsyncpa [#allocation4], 1

</llo_original>
